<compile_context>
chip_gen: v5e
topology: v5e:2x2
jax: 0.10.0
libtpu: 0.0.40
codegen_flags: <defaults>
</compile_context>

<pallas_src>
import functools

import jax
import jax.numpy as jnp
from jax.experimental import pallas as pl
from jax.experimental.pallas import tpu as pltpu

_DEFAULT_TILE_B = 4096     # rows per block; multiple of 8; ~8 MiB of VMEM windows.
_PALLAS_MIN_ROWS = 1024    # below this, a fused jnp expression beats a kernel launch.


def _mse_partial_kernel(pred_ref, gt_ref, out_ref, acc_ref, *,
                        b, tile_b, blocks_per_core, need_mask):
    core = pl.program_id(0)
    j = pl.program_id(1)

    @pl.when(j == 0)
    def _():
        acc_ref[...] = jnp.zeros_like(acc_ref)

    # Upcast once in VMEM; pure VPU elementwise work.
    d = pred_ref[...].astype(jnp.float32) - gt_ref[...].astype(jnp.float32)

    if need_mask:
        # Zero rows past the true batch size (ragged last block, or a fully
        # out-of-range block when the block count doesn't split evenly).
        g = core * blocks_per_core + j                       # global block index
        row = jax.lax.broadcasted_iota(jnp.int32, d.shape, 0)
        d = jnp.where(row + g * tile_b < b, d, 0.0)

    # Sublane-only reduce per step into a resident (1, C) lane accumulator;
    # the cross-lane reduce is deferred to the epilogue.
    acc_ref[...] += jnp.sum(d * d, axis=0, keepdims=True)

    @pl.when(j == pl.num_programs(1) - 1)
    def _():
        out_ref[...] = jnp.sum(acc_ref[...], axis=1, keepdims=True)


def _mse_mean_pallas(pred, gt, *, tile_b):
    b, c = pred.shape
    tile_b = max(8, (tile_b // 8) * 8)            # keep second-minor dim % 8 == 0
    eff_tile = b if b <= tile_b else tile_b       # block == full array when it fits
    num_blocks = -(-b // eff_tile)
    n_split = 2 if num_blocks >= 2 else 1         # v7x: one partial per TensorCore
    blocks_per_core = -(-num_blocks // n_split)
    need_mask = (b % eff_tile != 0) or (num_blocks % n_split != 0)

    def in_map(core, j):
        g = core * blocks_per_core + j
        # Clamp so a fully out-of-range block (odd block count) still fetches a
        # valid window; the in-kernel mask zeroes its contribution.
        return (jnp.minimum(g, num_blocks - 1), 0)

    kernel = functools.partial(
        _mse_partial_kernel, b=b, tile_b=eff_tile,
        blocks_per_core=blocks_per_core, need_mask=need_mask)

    partials = pl.pallas_call(
        kernel,
        out_shape=jax.ShapeDtypeStruct((n_split, 1), jnp.float32),
        grid=(n_split, blocks_per_core),
        in_specs=[
            pl.BlockSpec((eff_tile, c), in_map),
            pl.BlockSpec((eff_tile, c), in_map),
        ],
        out_specs=pl.BlockSpec((1, 1), lambda core, j: (core, 0)),
        scratch_shapes=[pltpu.VMEM((1, c), jnp.float32)],
        compiler_params=pltpu.CompilerParams(
            dimension_semantics=("parallel", "arbitrary")),
    )(pred, gt)

    # Add the per-core partial sums, normalise by the true element count.
    return jnp.sum(partials) * (1.0 / float(b * c))


def _mse_mean(pred, gt, *, tile_b=_DEFAULT_TILE_B, use_pallas=None):
    assert pred.shape == gt.shape and pred.ndim == 2
    b, _ = pred.shape
    if use_pallas is None:
        use_pallas = b >= _PALLAS_MIN_ROWS
    if not use_pallas:
        # Tiny-batch fast path: one small XLA fusion beats any kernel launch.
        d = pred.astype(jnp.float32) - gt.astype(jnp.float32)
        return jnp.mean(d * d)
    return _mse_mean_pallas(pred, gt, tile_b=tile_b)


def translation_only_loss(pred_rotation, pred_translation, gt_rotation,
                          gt_translation, *, tile_b=_DEFAULT_TILE_B,
                          use_pallas=None):
    """Forward pass of TranslationOnlyLoss.

    Returns (total_loss, trans_loss, rot_loss, quat_norm_loss). The rotation
    inputs are ignored and the rotation / quat-norm terms are zero, matching
    the PyTorch module.
    """
    del pred_rotation, gt_rotation  # ignored by the translation-only loss
    trans_loss = _mse_mean(pred_translation, gt_translation,
                           tile_b=tile_b, use_pallas=use_pallas)
    rot_loss = jnp.zeros((), jnp.float32)
    quat_norm_loss = jnp.zeros((), jnp.float32)
    total_loss = trans_loss
    return total_loss, trans_loss, rot_loss, quat_norm_loss


if __name__ == "__main__":
    key = jax.random.PRNGKey(0)
    k1, k2, k3, k4, k5, k6, k7, k8 = jax.random.split(key, 8)

    # Small shapes consistent with the module: batch of 8 poses.
    B = 8
    pred_rotation = jax.random.normal(k1, (B, 4), dtype=jnp.float32)
    gt_rotation = jax.random.normal(k2, (B, 4), dtype=jnp.float32)
    pred_translation = jax.random.normal(k3, (B, 3), dtype=jnp.float32)
    gt_translation = jax.random.normal(k4, (B, 3), dtype=jnp.float32)
    ref = jnp.mean((pred_translation - gt_translation) ** 2)

    # 1) Auto path (tiny batch -> fused jnp fast path).
    total, trans, rot, quat = translation_only_loss(
        pred_rotation, pred_translation, gt_rotation, gt_translation)
    total = jax.block_until_ready(total)
    assert jnp.allclose(trans, ref, rtol=1e-5, atol=1e-6), (trans, ref)
    assert jnp.allclose(total, trans)
    assert float(rot) == 0.0 and float(quat) == 0.0

    # 2) Same inputs, Pallas path forced (single resident block, grid (1,1)).
    _, trans_p, _, _ = translation_only_loss(
        pred_rotation, pred_translation, gt_rotation, gt_translation,
        use_pallas=True)
    trans_p = jax.block_until_ready(trans_p)
    assert jnp.allclose(trans_p, ref, rtol=1e-5, atol=1e-6), (trans_p, ref)

    # 3) Tiled + masked + dual-partial path: grid (2, 4), ragged last block.
    B2 = 1000
    p2 = jax.random.normal(k5, (B2, 3), dtype=jnp.float32)
    g2 = jax.random.normal(k6, (B2, 3), dtype=jnp.float32)
    _, trans2, _, _ = translation_only_loss(
        jnp.zeros((B2, 4), jnp.float32), p2,
        jnp.zeros((B2, 4), jnp.float32), g2, tile_b=128, use_pallas=True)
    trans2 = jax.block_until_ready(trans2)
    ref2 = jnp.mean((p2 - g2) ** 2)
    assert jnp.allclose(trans2, ref2, rtol=1e-4, atol=1e-6), (trans2, ref2)

    # 4) Odd block count: grid (2, 2), last block of core 1 fully out of range
    #    (clamped fetch, fully masked).
    B3 = 300
    p3 = jax.random.normal(k7, (B3, 3), dtype=jnp.float32)
    g3 = jax.random.normal(k8, (B3, 3), dtype=jnp.float32)
    _, trans3, _, _ = translation_only_loss(
        jnp.zeros((B3, 4), jnp.float32), p3,
        jnp.zeros((B3, 4), jnp.float32), g3, tile_b=128, use_pallas=True)
    trans3 = jax.block_until_ready(trans3)
    ref3 = jnp.mean((p3 - g3) ** 2)
    assert jnp.allclose(trans3, ref3, rtol=1e-4, atol=1e-6), (trans3, ref3)

    print("KERNEL_OK")
</pallas_src>

<mosaic_0001>
module attributes {stable_mosaic.version = 11 : i64} {
  func.func @_mse_partial_kernel(%arg0: i32, %arg1: i32, %arg2: memref<8x3xf32, #tpu.memory_space<vmem>>, %arg3: memref<8x3xf32, #tpu.memory_space<vmem>>, %arg4: memref<1x1xf32, #tpu.memory_space<vmem>>, %arg5: memref<1x3xf32, #tpu.memory_space<vmem>>) attributes {dimension_semantics = [#tpu.dimension_semantics<parallel>, #tpu.dimension_semantics<arbitrary>], iteration_bounds = array<i64: 1, 1>, scalar_prefetch = 0 : i64, scratch_operands = 1 : i64, tpu.core_type = #tpu.core_type<tc>, window_params = [{transform_indices = @transform_0, window_bounds = array<i64: 8, 3>}, {transform_indices = @transform_1, window_bounds = array<i64: 8, 3>}, {transform_indices = @transform_2, window_bounds = array<i64: 1, 1>}]} {
    %c0_i32 = arith.constant 0 : i32
    %0 = arith.cmpi eq, %arg1, %c0_i32 : i32
    %1 = arith.extui %0 : i1 to i32
    %c0_i32_0 = arith.constant 0 : i32
    %2 = arith.cmpi ne, %1, %c0_i32_0 : i32
    scf.if %2 {
      %cst_10 = arith.constant 0.000000e+00 : f32
      %15 = vector.broadcast %cst_10 : f32 to vector<1x3xf32>
      %c0_11 = arith.constant 0 : index
      %c0_12 = arith.constant 0 : index
      %16 = vector.load %arg5[%c0_11, %c0_12] : memref<1x3xf32, #tpu.memory_space<vmem>>, vector<1x3xf32>
      tpu.vector_store %arg5[%c0_11, %c0_12], %15 {strides = array<i32>} : memref<1x3xf32, #tpu.memory_space<vmem>>, vector<1x3xf32>,
    } else {
    }
    %c0 = arith.constant 0 : index
    %c0_1 = arith.constant 0 : index
    %3 = vector.load %arg2[%c0, %c0_1] : memref<8x3xf32, #tpu.memory_space<vmem>>, vector<8x3xf32>
    %c0_2 = arith.constant 0 : index
    %c0_3 = arith.constant 0 : index
    %4 = vector.load %arg3[%c0_2, %c0_3] : memref<8x3xf32, #tpu.memory_space<vmem>>, vector<8x3xf32>
    %5 = arith.subf %3, %4 : vector<8x3xf32>
    %c0_4 = arith.constant 0 : index
    %c0_5 = arith.constant 0 : index
    %6 = vector.load %arg5[%c0_4, %c0_5] : memref<1x3xf32, #tpu.memory_space<vmem>>, vector<1x3xf32>
    %7 = arith.mulf %5, %5 : vector<8x3xf32>
    %cst = arith.constant dense<0.000000e+00> : vector<3xf32>
    %8 = vector.multi_reduction <add>, %7, %cst [0] : vector<8x3xf32> to vector<3xf32>
    %9 = vector.shape_cast %8 : vector<3xf32> to vector<1x3xf32>
    %10 = arith.addf %6, %9 : vector<1x3xf32>
    %c0_6 = arith.constant 0 : index
    %c0_7 = arith.constant 0 : index
    %11 = vector.load %arg5[%c0_6, %c0_7] : memref<1x3xf32, #tpu.memory_space<vmem>>, vector<1x3xf32>
    tpu.vector_store %arg5[%c0_6, %c0_7], %10 {strides = array<i32>} : memref<1x3xf32, #tpu.memory_space<vmem>>, vector<1x3xf32>,
    %c0_i32_8 = arith.constant 0 : i32
    %12 = arith.cmpi eq, %arg1, %c0_i32_8 : i32
    %13 = arith.extui %12 : i1 to i32
    %c0_i32_9 = arith.constant 0 : i32
    %14 = arith.cmpi ne, %13, %c0_i32_9 : i32
    scf.if %14 {
      %c0_10 = arith.constant 0 : index
      %c0_11 = arith.constant 0 : index
      %15 = vector.load %arg5[%c0_10, %c0_11] : memref<1x3xf32, #tpu.memory_space<vmem>>, vector<1x3xf32>
      %cst_12 = arith.constant dense<0.000000e+00> : vector<1xf32>
      %16 = vector.multi_reduction <add>, %15, %cst_12 [1] : vector<1x3xf32> to vector<1xf32>
      %17 = vector.shape_cast %16 : vector<1xf32> to vector<1x1xf32>
      %c0_13 = arith.constant 0 : index
      %c0_14 = arith.constant 0 : index
      %18 = vector.load %arg4[%c0_13, %c0_14] : memref<1x1xf32, #tpu.memory_space<vmem>>, vector<1x1xf32>
      tpu.vector_store %arg4[%c0_13, %c0_14], %17 {strides = array<i32>} : memref<1x1xf32, #tpu.memory_space<vmem>>, vector<1x1xf32>,
    } else {
    }
    return
  }
  func.func @transform_0(%arg0: i32, %arg1: i32) -> (i32, i32) {
    %c1_i32 = arith.constant 1 : i32
    %0 = arith.muli %arg0, %c1_i32 : i32
    %1 = arith.addi %0, %arg1 : i32
    %c0_i32 = arith.constant 0 : i32
    %2 = arith.minsi %1, %c0_i32 : i32
    %c0_i32_0 = arith.constant 0 : i32
    %c0_i32_1 = arith.constant 0 : i32
    return %2, %c0_i32_0 : i32, i32
  }
  func.func @transform_1(%arg0: i32, %arg1: i32) -> (i32, i32) {
    %c1_i32 = arith.constant 1 : i32
    %0 = arith.muli %arg0, %c1_i32 : i32
    %1 = arith.addi %0, %arg1 : i32
    %c0_i32 = arith.constant 0 : i32
    %2 = arith.minsi %1, %c0_i32 : i32
    %c0_i32_0 = arith.constant 0 : i32
    %c0_i32_1 = arith.constant 0 : i32
    return %2, %c0_i32_0 : i32, i32
  }
  func.func @transform_2(%arg0: i32, %arg1: i32) -> (i32, i32) {
    %c0_i32 = arith.constant 0 : i32
    %c0_i32_0 = arith.constant 0 : i32
    return %arg0, %c0_i32 : i32, i32
  }
}

</mosaic_0001>

<llo_original>
// kernel: tpu_custom_call.1
$region0: #{tpu_custom_call.1}
  #allocation0 [shape = 'u32[]', space=smem, size = 0x4, offset = 0x4, fixed_abs, tag = 'smem constant byte address 0x4 - core index']
  #allocation1 [shape = 'u32[72,128]{1,0:T(1,128)}', space=vmem, size = 0x9000, scoped, tag = 'internal scratch']
  #allocation2 [shape = 'f32[1,3]{1,0:T(1,128)}', space=vmem, size = 0x200, scoped, tag = 'scratch operand']
  %s0 = inlined_call_operand.vmem [shape: f32[8,3], index: 0, kind: input, shape index: {}]
  %s1 = inlined_call_operand.vmem [shape: f32[8,3], index: 1, kind: input, shape index: {}]
  %s2 = inlined_call_operand.hbm [shape: f32[1,1], index: 2, kind: output, shape index: {}]
  %s3 = sld [smem:[#allocation0]]
  $region26: #{tpu_custom_call.1} parent=0
    _
  %s5 = ssub.s32 1, %s3
  %s6 = scalar_select 0, %s5, %s3
  $region1: #{tpu_custom_call.1} parent=0
    #allocation3 [shape = 'u8[512]{0}', space=vmem, size = 0x400, scoped, tag = 'output window, operand 0, single buffered']
    #allocation4 [shape = 's32[1]{0}', space=sflag, size = 0x4, scoped, tag = 'scoped memory for tpu_custom_call.1']
    %7 = vsyncpa [#allocation4], 0
    // Predicated region
    $region2: #{tpu_custom_call.1} parent=1 // pred_check
      _
    $region3: #{tpu_custom_call.1} parent=1 // pred_check_branch
      %9 = sbr.rel (0) target = $region5
    $region4: #{tpu_custom_call.1} parent=1 // pred_region
      %s10 = sadd.s32 0, 0
      %p11 = scmp.lt.s32.totalorder %s10, 0
      %s12 = scalar_select %p11, %s10, 0
      %p13 = scmp.lt.s32.totalorder %s12, 0
      %s14 = scalar_select %p13, %s12, 0
      %s15 = smul.addr %s14, 8
      %s16 = scalar_lea.vmem %s0, %s15
      %s17 = sadd.s32 0, 0
      %p18 = scmp.lt.s32.totalorder %s17, 0
      %s19 = scalar_select %p18, %s17, 0
    $region5: #{tpu_custom_call.1} parent=1 // pred_fallthru
      _
    // Predicated region
    $region6: #{tpu_custom_call.1} parent=1 // pred_check
      _
    $region7: #{tpu_custom_call.1} parent=1 // pred_check_branch
      %21 = sbr.rel (0) target = $region9
    $region8: #{tpu_custom_call.1} parent=1 // pred_region
      %s22 = sadd.s32 0, 0
      %p23 = scmp.lt.s32.totalorder %s22, 0
      %s24 = scalar_select %p23, %s22, 0
      %p25 = scmp.lt.s32.totalorder %s24, 0
      %s26 = scalar_select %p25, %s24, 0
      %s27 = smul.addr %s26, 8
      %s28 = scalar_lea.vmem %s1, %s27
      %s29 = sadd.s32 0, 0
      %p30 = scmp.lt.s32.totalorder %s29, 0
      %s31 = scalar_select %p30, %s29, 0
    $region9: #{tpu_custom_call.1} parent=1 // pred_fallthru
      _
    %s32 = sadd.s32 0, 0
    %p33 = scmp.lt.s32.totalorder %s32, 0
    %s34 = scalar_select %p33, %s32, 0
    %p35 = scmp.lt.s32.totalorder %s34, 0
    %s36 = scalar_select %p35, %s34, 0
    %s37 = smul.addr %s36, 8
    %s38 = scalar_lea.vmem %s0, %s37
    %s39 = sadd.s32 0, 0
    %p40 = scmp.lt.s32.totalorder %s39, 0
    %s41 = scalar_select %p40, %s39, 0
    %p42 = scmp.lt.s32.totalorder %s41, 0
    %s43 = scalar_select %p42, %s41, 0
    %s44 = smul.addr %s43, 8
    %s45 = scalar_lea.vmem %s1, %s44
    %s46 = sadd.s32 0, 0
    %p47 = scmp.lt.s32.totalorder %s46, 0
    %s48 = scalar_select %p47, %s46, 0
    %p49 = scmp.lt.s32.totalorder %s48, 0
    %s50 = scalar_select %p49, %s48, 0
    %s51 = smul.addr %s50, 8
    %s52 = scalar_lea.vmem %s0, %s51
    %s53 = sadd.s32 0, 0
    %p54 = scmp.lt.s32.totalorder %s53, 0
    %s55 = scalar_select %p54, %s53, 0
    %s56 = sadd.s32 0, 0
    %p57 = scmp.lt.s32.totalorder %s56, 0
    %s58 = scalar_select %p57, %s56, 0
    %p59 = scmp.lt.s32.totalorder %s58, 0
    %s60 = scalar_select %p59, %s58, 0
    %s61 = smul.addr %s60, 8
    %s62 = scalar_lea.vmem %s1, %s61
    %s63 = sadd.s32 0, 0
    %p64 = scmp.lt.s32.totalorder %s63, 0
    %s65 = scalar_select %p64, %s63, 0
    %p66 = scmp.eq.s32.totalorder 0, 0
    // Predicated region
    $region10: #{tpu_custom_call.1} parent=1 // pred_check
      %p67 = pneg %p66
    $region11: #{tpu_custom_call.1} parent=1 // pred_check_branch
      %69 = sbr.rel (%p67) target = $region13
    $region12: #{tpu_custom_call.1} parent=1 // pred_region
      %vm70 = vcmask 16384
      %71 = vst.msk [vmem:[#allocation2] sm:$0x1] %vm70, 0.0
    $region13: #{tpu_custom_call.1} parent=1 // pred_fallthru
      _
    %v72 = vld [vmem:[%s52] sm:$0xff]
    %v73 = vld [vmem:[%s62] sm:$0xff]
    %v74 = vsub.f32 %v72, %v73
    %v75 = vld [vmem:[#allocation2] sm:$0x1]
    %v76 = vmul.f32 %v74, %v74
    %vm77 = vcmask 23552
    %v78 = vsel %vm77, %v76, 0.0
    %v79 = vrot.slane %v78, 4
    %v80 = vadd.f32 %v78, %v79
    %v81 = vrot.slane %v80, 2
    %v82 = vadd.f32 %v80, %v81
    %v83 = vrot.slane %v82, 1
    %v84 = vadd.f32 %v82, %v83
    %v85 = vadd.f32 %v75, %v84
    %vm86 = vcmask 16384
    %87 = vst.msk [vmem:[#allocation2] sm:$0x1] %vm86, %v85
    // Predicated region
    $region14: #{tpu_custom_call.1} parent=1 // pred_check
      %p88 = pneg %p66
    $region15: #{tpu_custom_call.1} parent=1 // pred_check_branch
      %90 = sbr.rel (%p88) target = $region17
    $region16: #{tpu_custom_call.1} parent=1 // pred_region
      %v91 = vld [vmem:[#allocation2] sm:$0x1]
      %v92 = vsel %vm86, %v91, 0.0
      %93 = vadd.xlane.f32.xlu0 %v92
      %v94 = vpop.xlane.xlu0 %93
      %vm95 = vcmask 0
      %96 = vst.msk [vmem:[#allocation3] sm:$0x1] %vm95, %v94
    $region17: #{tpu_custom_call.1} parent=1 // pred_fallthru
      _
    // Predicated region
    $region18: #{tpu_custom_call.1} parent=1 // pred_check
      _
    $region19: #{tpu_custom_call.1} parent=1 // pred_check_branch
      %98 = sbr.rel (0) target = $region21
    $region20: #{tpu_custom_call.1} parent=1 // pred_region
      %100 = vsyncadd [#allocation4], 0
      %s102 = sshll.u32 [#allocation3], 4
      %s103 = int_to_ptr.vmem [resolvable:$true] %s102
      %s104 = sshll.u32 %s2, 4
      %s105 = int_to_ptr.hbm [resolvable:$true] %s104
      %107 = dma.vmem_to_hbm [thread:$0]  %s103, 16, %s105, [#allocation4]
    $region21: #{tpu_custom_call.1} parent=1 // pred_fallthru
      _
    // Predicated region
    $region22: #{tpu_custom_call.1} parent=1 // pred_check
      _
    $region23: #{tpu_custom_call.1} parent=1 // pred_check_branch
      %109 = sbr.rel (0) target = $region25
    $region24: #{tpu_custom_call.1} parent=1 // pred_region
      %111 = dma.done [#allocation4], 16
    $region25: #{tpu_custom_call.1} parent=1 // pred_fallthru
      _
    %112 = vsyncpa [#allocation4], 1

</llo_original>
